<compile_context>
chip_gen: v7x
topology: tpu7x:2x2x1
jax: 0.10.0
libtpu: 0.0.40
codegen_flags: <defaults>
</compile_context>

<pallas_src>
import functools

import jax
import jax.numpy as jnp
from jax.experimental import pallas as pl
from jax.experimental.pallas import tpu as pltpu


def _round_up(x, m):
    return ((x + m - 1) // m) * m


def _gcn_agg_kernel(sim_ref, x_ref, w_ref, b_ref, o_ref, acc_ref):
    """acc = sum_k sim[i, k] @ x[k];  out = relu(acc @ W + b)   (W is [in, out])."""
    k = pl.program_id(1)

    @pl.when(k == 0)
    def _init():
        acc_ref[...] = jnp.zeros_like(acc_ref)

    acc_ref[...] += jnp.dot(sim_ref[...], x_ref[...],
                            preferred_element_type=jnp.float32)

    @pl.when(k == pl.num_programs(1) - 1)
    def _finish():
        h = acc_ref[...].astype(w_ref.dtype)
        y = jnp.dot(h, w_ref[...], preferred_element_type=jnp.float32) + b_ref[...]
        o_ref[...] = jnp.maximum(y, 0.0).astype(o_ref.dtype)


def _gcn_fused_kernel(sim_ref, z_ref, b_ref, o_ref, acc_ref):
    """z = X @ W^T precomputed;  acc = sum_k sim[i, k] @ z[k];  out = relu(acc + b)."""
    k = pl.program_id(1)

    @pl.when(k == 0)
    def _init():
        acc_ref[...] = jnp.zeros_like(acc_ref)

    acc_ref[...] += jnp.dot(sim_ref[...], z_ref[...],
                            preferred_element_type=jnp.float32)

    @pl.when(k == pl.num_programs(1) - 1)
    def _finish():
        o_ref[...] = jnp.maximum(acc_ref[...] + b_ref[...], 0.0).astype(o_ref.dtype)


@functools.partial(jax.jit, static_argnames=("tm", "tk"))
def gcn_layer(similar, inputs, weight, bias, *, tm=256, tk=512):
    """relu((similar @ inputs) @ weight.T + bias).

    similar: [N, N], inputs: [N, in_feats],
    weight:  [out_feats, in_feats]  (PyTorch nn.Linear layout),
    bias:    [out_feats].
    """
    N = similar.shape[0]
    in_feats = inputs.shape[1]
    out_feats = weight.shape[0]
    dtype = inputs.dtype

    # --- tile selection (shapes are static under jit) ------------------------
    tm_eff = min(tm, _round_up(N, 8))      # sublane dim of sim / out blocks
    tk_eff = min(tk, _round_up(N, 128))    # lane dim of sim block / sublane of rhs
    n_rows = _round_up(N, tm_eff)          # padded row count
    n_k = _round_up(N, tk_eff)             # padded contraction length
    in_pad = _round_up(in_feats, 128)      # lane-dense feature dims
    out_pad = _round_up(out_feats, 128)

    # --- zero padding (pad rows/cols contribute nothing and are sliced off) --
    sim_p = jnp.pad(similar, ((0, n_rows - N), (0, n_k - N)))
    x_p = jnp.pad(inputs, ((0, n_k - N), (0, in_pad - in_feats)))
    w_t = jnp.pad(weight.T, ((0, in_pad - in_feats), (0, out_pad - out_feats)))
    b_p = jnp.pad(bias, (0, out_pad - out_feats)).reshape(1, out_pad).astype(jnp.float32)

    grid = (n_rows // tm_eff, n_k // tk_eff)
    # TODO(synk): for bf16/fp8-tolerant graphs, cast sim_p / x_p / w_t here
    # (accumulation stays f32 via preferred_element_type); kept f32 for exactness.

    compiler_params = pltpu.CompilerParams(
        dimension_semantics=("parallel", "arbitrary"),
        vmem_limit_bytes=48 * 1024 * 1024,   # explicit limit; headroom on v7x's 64 MiB
    )

    fold_w = out_feats <= in_feats  # static choice of matmul ordering
    if fold_w:
        # (X @ W^T) first: shrinks the streamed RHS and the dominant N*N matmul.
        z_p = jnp.dot(x_p, w_t, preferred_element_type=jnp.float32).astype(dtype)
        out_p = pl.pallas_call(
            _gcn_fused_kernel,
            out_shape=jax.ShapeDtypeStruct((n_rows, out_pad), dtype),
            grid_spec=pltpu.PrefetchScalarGridSpec(
                num_scalar_prefetch=0,
                grid=grid,
                in_specs=[
                    pl.BlockSpec((tm_eff, tk_eff), lambda i, k: (i, k)),
                    pl.BlockSpec((tk_eff, out_pad), lambda i, k: (k, 0)),
                    pl.BlockSpec((1, out_pad), lambda i, k: (0, 0)),
                ],
                out_specs=pl.BlockSpec((tm_eff, out_pad), lambda i, k: (i, 0)),
                scratch_shapes=[pltpu.VMEM((tm_eff, out_pad), jnp.float32)],
            ),
            compiler_params=compiler_params,
        )(sim_p, z_p, b_p)
    else:
        # Aggregate first (similar @ X), project + bias + ReLU in the epilogue.
        out_p = pl.pallas_call(
            _gcn_agg_kernel,
            out_shape=jax.ShapeDtypeStruct((n_rows, out_pad), dtype),
            grid_spec=pltpu.PrefetchScalarGridSpec(
                num_scalar_prefetch=0,
                grid=grid,
                in_specs=[
                    pl.BlockSpec((tm_eff, tk_eff), lambda i, k: (i, k)),
                    pl.BlockSpec((tk_eff, in_pad), lambda i, k: (k, 0)),
                    pl.BlockSpec((in_pad, out_pad), lambda i, k: (0, 0)),
                    pl.BlockSpec((1, out_pad), lambda i, k: (0, 0)),
                ],
                out_specs=pl.BlockSpec((tm_eff, out_pad), lambda i, k: (i, 0)),
                scratch_shapes=[pltpu.VMEM((tm_eff, in_pad), jnp.float32)],
            ),
            compiler_params=compiler_params,
        )(sim_p, x_p, w_t, b_p)

    return out_p[:N, :out_feats]


if __name__ == "__main__":
    # Small deterministic example: 8 nodes, in_feats=16, out_feats=32.
    N, in_feats, out_feats = 8, 16, 32
    key = jax.random.PRNGKey(0)
    k_sim, k_x, k_w, k_b = jax.random.split(key, 4)

    similar = jax.random.uniform(k_sim, (N, N), dtype=jnp.float32)
    inputs = jax.random.normal(k_x, (N, in_feats), dtype=jnp.float32)

    # nn.Linear(in_feats, out_feats) params in PyTorch layout [out, in].
    bound = 1.0 / (in_feats ** 0.5)
    weight = jax.random.uniform(k_w, (out_feats, in_feats), dtype=jnp.float32,
                                minval=-bound, maxval=bound)
    bias = jax.random.uniform(k_b, (out_feats,), dtype=jnp.float32,
                              minval=-bound, maxval=bound)

    out = gcn_layer(similar, inputs, weight, bias)
    jax.block_until_ready(out)

    # Reference check in plain JAX (matches torch.relu(linear(similar @ inputs))).
    ref = jnp.maximum(similar @ inputs @ weight.T + bias[None, :], 0.0)
    assert out.shape == (N, out_feats)
    assert jnp.allclose(out, ref, atol=1e-5, rtol=1e-5), "mismatch vs reference"

    print("KERNEL_OK")
</pallas_src>

<mosaic_0001>
module attributes {stable_mosaic.version = 11 : i64} {
  func.func @_gcn_agg_kernel(%arg0: i32, %arg1: i32, %arg2: memref<8x128xf32, #tpu.memory_space<vmem>>, %arg3: memref<128x128xf32, #tpu.memory_space<vmem>>, %arg4: memref<128x128xf32, #tpu.memory_space<vmem>>, %arg5: memref<1x128xf32, #tpu.memory_space<vmem>>, %arg6: memref<8x128xf32, #tpu.memory_space<vmem>>, %arg7: memref<8x128xf32, #tpu.memory_space<vmem>>) attributes {dimension_semantics = [#tpu.dimension_semantics<parallel>, #tpu.dimension_semantics<arbitrary>], iteration_bounds = array<i64: 1, 1>, scalar_prefetch = 0 : i64, scratch_operands = 1 : i64, tpu.core_type = #tpu.core_type<tc>, window_params = [{transform_indices = @transform_0, window_bounds = array<i64: 8, 128>}, {transform_indices = @transform_1, window_bounds = array<i64: 128, 128>}, {pipeline_mode = #tpu.pipeline_mode<synchronous>, transform_indices = @transform_2, window_bounds = array<i64: 128, 128>}, {pipeline_mode = #tpu.pipeline_mode<synchronous>, transform_indices = @transform_3, window_bounds = array<i64: 1, 128>}, {transform_indices = @transform_4, window_bounds = array<i64: 8, 128>}]} {
    %c0_i32 = arith.constant 0 : i32
    %0 = arith.cmpi eq, %arg1, %c0_i32 : i32
    %1 = arith.extui %0 : i1 to i32
    %c0_i32_0 = arith.constant 0 : i32
    %2 = arith.cmpi ne, %1, %c0_i32_0 : i32
    scf.if %2 {
      %cst_10 = arith.constant 0.000000e+00 : f32
      %12 = vector.broadcast %cst_10 : f32 to vector<8x128xf32>
      %c0_11 = arith.constant 0 : index
      %c0_12 = arith.constant 0 : index
      %13 = vector.load %arg7[%c0_11, %c0_12] : memref<8x128xf32, #tpu.memory_space<vmem>>, vector<8x128xf32>
      tpu.vector_store %arg7[%c0_11, %c0_12], %12 {strides = array<i32>} : memref<8x128xf32, #tpu.memory_space<vmem>>, vector<8x128xf32>,
    } else {
    }
    %c0 = arith.constant 0 : index
    %c0_1 = arith.constant 0 : index
    %3 = vector.load %arg7[%c0, %c0_1] : memref<8x128xf32, #tpu.memory_space<vmem>>, vector<8x128xf32>
    %c0_2 = arith.constant 0 : index
    %c0_3 = arith.constant 0 : index
    %4 = vector.load %arg2[%c0_2, %c0_3] : memref<8x128xf32, #tpu.memory_space<vmem>>, vector<8x128xf32>
    %c0_4 = arith.constant 0 : index
    %c0_5 = arith.constant 0 : index
    %5 = vector.load %arg3[%c0_4, %c0_5] : memref<128x128xf32, #tpu.memory_space<vmem>>, vector<128x128xf32>
    %cst = arith.constant dense<0.000000e+00> : vector<8x128xf32>
    %6 = tpu.matmul %4, %5, %cst {dimension_numbers = #tpu.dot_dimension_numbers<[1], [0], [0], [1], [0, 0, 1, 1], [], []>} : vector<8x128xf32>, vector<128x128xf32>, vector<8x128xf32> -> vector<8x128xf32>
    %7 = arith.addf %3, %6 : vector<8x128xf32>
    %c0_6 = arith.constant 0 : index
    %c0_7 = arith.constant 0 : index
    %8 = vector.load %arg7[%c0_6, %c0_7] : memref<8x128xf32, #tpu.memory_space<vmem>>, vector<8x128xf32>
    tpu.vector_store %arg7[%c0_6, %c0_7], %7 {strides = array<i32>} : memref<8x128xf32, #tpu.memory_space<vmem>>, vector<8x128xf32>,
    %c0_i32_8 = arith.constant 0 : i32
    %9 = arith.cmpi eq, %arg1, %c0_i32_8 : i32
    %10 = arith.extui %9 : i1 to i32
    %c0_i32_9 = arith.constant 0 : i32
    %11 = arith.cmpi ne, %10, %c0_i32_9 : i32
    scf.if %11 {
      %c0_10 = arith.constant 0 : index
      %c0_11 = arith.constant 0 : index
      %12 = vector.load %arg7[%c0_10, %c0_11] : memref<8x128xf32, #tpu.memory_space<vmem>>, vector<8x128xf32>
      %c0_12 = arith.constant 0 : index
      %c0_13 = arith.constant 0 : index
      %13 = vector.load %arg4[%c0_12, %c0_13] : memref<128x128xf32, #tpu.memory_space<vmem>>, vector<128x128xf32>
      %cst_14 = arith.constant dense<0.000000e+00> : vector<8x128xf32>
      %14 = tpu.matmul %12, %13, %cst_14 {dimension_numbers = #tpu.dot_dimension_numbers<[1], [0], [0], [1], [0, 0, 1, 1], [], []>} : vector<8x128xf32>, vector<128x128xf32>, vector<8x128xf32> -> vector<8x128xf32>
      %c0_15 = arith.constant 0 : index
      %c0_16 = arith.constant 0 : index
      %15 = vector.load %arg5[%c0_15, %c0_16] : memref<1x128xf32, #tpu.memory_space<vmem>>, vector<1x128xf32>
      %16 = vector.broadcast %15 : vector<1x128xf32> to vector<8x128xf32>
      %17 = arith.addf %14, %16 : vector<8x128xf32>
      %cst_17 = arith.constant 0.000000e+00 : f32
      %18 = vector.broadcast %cst_17 : f32 to vector<8x128xf32>
      %19 = arith.maximumf %17, %18 : vector<8x128xf32>
      %c0_18 = arith.constant 0 : index
      %c0_19 = arith.constant 0 : index
      %20 = vector.load %arg6[%c0_18, %c0_19] : memref<8x128xf32, #tpu.memory_space<vmem>>, vector<8x128xf32>
      tpu.vector_store %arg6[%c0_18, %c0_19], %19 {strides = array<i32>} : memref<8x128xf32, #tpu.memory_space<vmem>>, vector<8x128xf32>,
    } else {
    }
    return
  }
  func.func @transform_0(%arg0: i32, %arg1: i32) -> (i32, i32) {
    %c0_i32 = arith.constant 0 : i32
    return %arg0, %arg1 : i32, i32
  }
  func.func @transform_1(%arg0: i32, %arg1: i32) -> (i32, i32) {
    %c0_i32 = arith.constant 0 : i32
    %c0_i32_0 = arith.constant 0 : i32
    return %arg1, %c0_i32 : i32, i32
  }
  func.func @transform_2(%arg0: i32, %arg1: i32) -> (i32, i32) {
    %c0_i32 = arith.constant 0 : i32
    %c0_i32_0 = arith.constant 0 : i32
    %c0_i32_1 = arith.constant 0 : i32
    return %c0_i32, %c0_i32_0 : i32, i32
  }
  func.func @transform_3(%arg0: i32, %arg1: i32) -> (i32, i32) {
    %c0_i32 = arith.constant 0 : i32
    %c0_i32_0 = arith.constant 0 : i32
    %c0_i32_1 = arith.constant 0 : i32
    return %c0_i32, %c0_i32_0 : i32, i32
  }
  func.func @transform_4(%arg0: i32, %arg1: i32) -> (i32, i32) {
    %c0_i32 = arith.constant 0 : i32
    %c0_i32_0 = arith.constant 0 : i32
    return %arg0, %c0_i32 : i32, i32
  }
}

</mosaic_0001>

<llo_original>
// kernel: gcn_layer.1
$region0: #{gcn_layer.1}
  #allocation0 [shape = 'u32[]', space=smem, size = 0x4, offset = 0x4, fixed_abs, tag = 'smem constant byte address 0x4 - core index']
  #allocation1 [shape = 'u32[144,128]{1,0:T(1,128)}', space=vmem, size = 0x12000, scoped, tag = 'internal scratch']
  #allocation2 [shape = 'f32[8,128]{1,0:T(8,128)}', space=vmem, size = 0x1000, scoped, tag = 'scratch operand']
  %s0 = inlined_call_operand.vmem [shape: f32[8,128], index: 0, kind: input, shape index: {}]
  %s1 = inlined_call_operand.vmem [shape: f32[128,128], index: 1, kind: input, shape index: {}]
  %s2 = inlined_call_operand.vmem [shape: f32[128,128], index: 2, kind: input, shape index: {}]
  %s3 = inlined_call_operand.vmem [shape: f32[1,128], index: 3, kind: input, shape index: {}]
  %s4 = inlined_call_operand.hbm [shape: f32[8,128], index: 4, kind: output, shape index: {}]
  %s5 = sld [smem:[#allocation0]]
  $region34: #{gcn_layer.1} parent=0
    _
  %s7 = ssub.s32 1, %s5
  %s8 = scalar_select 0, %s7, %s5
  $region1: #{gcn_layer.1} parent=0
    #allocation3 [shape = 'u8[4096]{0}', space=vmem, size = 0x1000, scoped, tag = 'output window, operand 0, single buffered']
    #allocation4 [shape = 's32[1]{0}', space=sflag, size = 0x4, scoped, tag = 'scoped memory for gcn_layer.1']
    %9 = vsyncpa [#allocation4], 0
    // Predicated region
    $region2: #{gcn_layer.1} parent=1 // pred_check
      _
    $region3: #{gcn_layer.1} parent=1 // pred_check_branch
      %11 = sbr.rel (0) target = $region5
    $region4: #{gcn_layer.1} parent=1 // pred_region
      _
    $region5: #{gcn_layer.1} parent=1 // pred_fallthru
      _
    // Predicated region
    $region6: #{gcn_layer.1} parent=1 // pred_check
      _
    $region7: #{gcn_layer.1} parent=1 // pred_check_branch
      %13 = sbr.rel (0) target = $region9
    $region8: #{gcn_layer.1} parent=1 // pred_region
      _
    $region9: #{gcn_layer.1} parent=1 // pred_fallthru
      _
    // Predicated region
    $region10: #{gcn_layer.1} parent=1 // pred_check
      _
    $region11: #{gcn_layer.1} parent=1 // pred_check_branch
      %15 = sbr.rel (0) target = $region13
    $region12: #{gcn_layer.1} parent=1 // pred_region
      _
    $region13: #{gcn_layer.1} parent=1 // pred_fallthru
      _
    // Predicated region
    $region14: #{gcn_layer.1} parent=1 // pred_check
      _
    $region15: #{gcn_layer.1} parent=1 // pred_check_branch
      %17 = sbr.rel (0) target = $region17
    $region16: #{gcn_layer.1} parent=1 // pred_region
      _
    $region17: #{gcn_layer.1} parent=1 // pred_fallthru
      _
    %p18 = scmp.eq.s32.totalorder 0, 0
    // Predicated region
    $region18: #{gcn_layer.1} parent=1 // pred_check
      %p19 = pneg %p18
    $region19: #{gcn_layer.1} parent=1 // pred_check_branch
      %21 = sbr.rel (%p19) target = $region21
    $region20: #{gcn_layer.1} parent=1 // pred_region
      %22 = vst [vmem:[#allocation2] sm:$0xff] 0.0
    $region21: #{gcn_layer.1} parent=1 // pred_fallthru
      _
    %v23 = vld [vmem:[#allocation2] sm:$0xff]
    %v24 = vld [vmem:[%s0] sm:$0xff]
    %v25 = vld [vmem:[%s1] sm:$0xff]
    %v26 = vld [vmem:[%s1 + $0x8] sm:$0xff]
    %v27 = vld [vmem:[%s1 + $0x10] sm:$0xff]
    %v28 = vld [vmem:[%s1 + $0x18] sm:$0xff]
    %v29 = vld [vmem:[%s1 + $0x20] sm:$0xff]
    %v30 = vld [vmem:[%s1 + $0x28] sm:$0xff]
    %v31 = vld [vmem:[%s1 + $0x30] sm:$0xff]
    %v32 = vld [vmem:[%s1 + $0x38] sm:$0xff]
    %v33 = vld [vmem:[%s1 + $0x40] sm:$0xff]
    %v34 = vld [vmem:[%s1 + $0x48] sm:$0xff]
    %v35 = vld [vmem:[%s1 + $0x50] sm:$0xff]
    %v36 = vld [vmem:[%s1 + $0x58] sm:$0xff]
    %v37 = vld [vmem:[%s1 + $0x60] sm:$0xff]
    %v38 = vld [vmem:[%s1 + $0x68] sm:$0xff]
    %v39 = vld [vmem:[%s1 + $0x70] sm:$0xff]
    %v40 = vld [vmem:[%s1 + $0x78] sm:$0xff]
    %41 = vmatprep.subr.mxu0 0.0
    %42 = vmatpush1.msra.mxu0 %v25
    %43 = vmatprep.subr.mxu0 0.0
    %44 = vmatpush1.msra.mxu0 %v26
    %45 = vmatprep.subr.mxu0 0.0
    %46 = vmatpush1.msra.mxu0 %v27
    %47 = vmatprep.subr.mxu0 0.0
    %48 = vmatpush1.msra.mxu0 %v28
    %49 = vmatprep.subr.mxu0 0.0
    %50 = vmatpush1.msra.mxu0 %v29
    %51 = vmatprep.subr.mxu0 0.0
    %52 = vmatpush1.msra.mxu0 %v30
    %53 = vmatprep.subr.mxu0 0.0
    %54 = vmatpush1.msra.mxu0 %v31
    %55 = vmatprep.subr.mxu0 0.0
    %56 = vmatpush1.msra.mxu0 %v32
    %57 = vmatprep.subr.mxu0 0.0
    %58 = vmatpush1.msra.mxu0 %v33
    %59 = vmatprep.subr.mxu0 0.0
    %60 = vmatpush1.msra.mxu0 %v34
    %61 = vmatprep.subr.mxu0 0.0
    %62 = vmatpush1.msra.mxu0 %v35
    %63 = vmatprep.subr.mxu0 0.0
    %64 = vmatpush1.msra.mxu0 %v36
    %65 = vmatprep.subr.mxu0 0.0
    %66 = vmatpush1.msra.mxu0 %v37
    %67 = vmatprep.subr.mxu0 0.0
    %68 = vmatpush1.msra.mxu0 %v38
    %69 = vmatprep.subr.mxu0 0.0
    %70 = vmatpush1.msra.mxu0 %v39
    %71 = vmatprep.subr.mxu0 0.0
    %72 = vmatpush1.msra.mxu0 %v40
    %73 = vmatprep.subr.mxu0 0.0
    %74 = vmatpush1.msra.mxu0 0.0
    %75 = vmatprep.subr.mxu0 0.0
    %76 = vmatpush1.msra.mxu0 0.0
    %77 = vmatprep.subr.mxu0 0.0
    %78 = vmatpush1.msra.mxu0 0.0
    %79 = vmatprep.subr.mxu0 0.0
    %80 = vmatpush1.msra.mxu0 0.0
    %81 = vmatprep.subr.mxu0 0.0
    %82 = vmatpush1.msra.mxu0 0.0
    %83 = vmatprep.subr.mxu0 0.0
    %84 = vmatpush1.msra.mxu0 0.0
    %85 = vmatprep.subr.mxu0 0.0
    %86 = vmatpush1.msra.mxu0 0.0
    %87 = vmatprep.subr.mxu0 0.0
    %88 = vmatpush1.msra.mxu0 0.0
    %89 = vmatprep.subr.mxu0 0.0
    %90 = vmatpush1.msra.mxu0 0.0
    %91 = vmatprep.subr.mxu0 0.0
    %92 = vmatpush1.msra.mxu0 0.0
    %93 = vmatprep.subr.mxu0 0.0
    %94 = vmatpush1.msra.mxu0 0.0
    %95 = vmatprep.subr.mxu0 0.0
    %96 = vmatpush1.msra.mxu0 0.0
    %97 = vmatprep.subr.mxu0 0.0
    %98 = vmatpush1.msra.mxu0 0.0
    %99 = vmatprep.subr.mxu0 0.0
    %100 = vmatpush1.msra.mxu0 0.0
    %101 = vmatprep.subr.mxu0 0.0
    %102 = vmatpush1.msra.mxu0 0.0
    %103 = vmatprep.subr.mxu0 0.0
    %104 = vmatpush1.msra.mxu0 0.0
    %105 = vmatprep.mubr.f32.mxu0 0.0
    %106 = vmatmul.mubr.f32.gmra.mrb[0].mxu0 %v24
    %v107 = vpop.f32.mrb[0].mxu0
    %v108 = vadd.f32 0.0, %v107
    %v109 = vpop.f32.mrb[0].mxu0
    %110 = vdwg.mxu0
    %v111 = vadd.f32 %v23, %v108
    %112 = vst [vmem:[#allocation2] sm:$0xff] %v111
    // Predicated region
    $region22: #{gcn_layer.1} parent=1 // pred_check
      %p113 = pneg %p18
    $region23: #{gcn_layer.1} parent=1 // pred_check_branch
      %115 = sbr.rel (%p113) target = $region25
    $region24: #{gcn_layer.1} parent=1 // pred_region
      %v116 = vld [vmem:[#allocation2] sm:$0xff]
      %v117 = vld [vmem:[%s2] sm:$0xff]
      %v118 = vld [vmem:[%s2 + $0x8] sm:$0xff]
      %v119 = vld [vmem:[%s2 + $0x10] sm:$0xff]
      %v120 = vld [vmem:[%s2 + $0x18] sm:$0xff]
      %v121 = vld [vmem:[%s2 + $0x20] sm:$0xff]
      %v122 = vld [vmem:[%s2 + $0x28] sm:$0xff]
      %v123 = vld [vmem:[%s2 + $0x30] sm:$0xff]
      %v124 = vld [vmem:[%s2 + $0x38] sm:$0xff]
      %v125 = vld [vmem:[%s2 + $0x40] sm:$0xff]
      %v126 = vld [vmem:[%s2 + $0x48] sm:$0xff]
      %v127 = vld [vmem:[%s2 + $0x50] sm:$0xff]
      %v128 = vld [vmem:[%s2 + $0x58] sm:$0xff]
      %v129 = vld [vmem:[%s2 + $0x60] sm:$0xff]
      %v130 = vld [vmem:[%s2 + $0x68] sm:$0xff]
      %v131 = vld [vmem:[%s2 + $0x70] sm:$0xff]
      %v132 = vld [vmem:[%s2 + $0x78] sm:$0xff]
      %v133 = vld [vmem:[%s3] sm:$0x1]
      %v135 = vlaneseq
      %v136 = vshrl.u32 %v135, 7
      %v137 = vsub.s32 0, %v136
      %v138 = vrot.slane %v133, %v137
      %140 = vmatprep.subr.mxu0 0.0
      %141 = vmatpush1.msra.mxu0 %v117
      %142 = vmatprep.subr.mxu0 0.0
      %143 = vmatpush1.msra.mxu0 %v118
      %144 = vmatprep.subr.mxu0 0.0
      %145 = vmatpush1.msra.mxu0 %v119
      %146 = vmatprep.subr.mxu0 0.0
      %147 = vmatpush1.msra.mxu0 %v120
      %148 = vmatprep.subr.mxu0 0.0
      %149 = vmatpush1.msra.mxu0 %v121
      %150 = vmatprep.subr.mxu0 0.0
      %151 = vmatpush1.msra.mxu0 %v122
      %152 = vmatprep.subr.mxu0 0.0
      %153 = vmatpush1.msra.mxu0 %v123
      %154 = vmatprep.subr.mxu0 0.0
      %155 = vmatpush1.msra.mxu0 %v124
      %156 = vmatprep.subr.mxu0 0.0
      %157 = vmatpush1.msra.mxu0 %v125
      %158 = vmatprep.subr.mxu0 0.0
      %159 = vmatpush1.msra.mxu0 %v126
      %160 = vmatprep.subr.mxu0 0.0
      %161 = vmatpush1.msra.mxu0 %v127
      %162 = vmatprep.subr.mxu0 0.0
      %163 = vmatpush1.msra.mxu0 %v128
      %164 = vmatprep.subr.mxu0 0.0
      %165 = vmatpush1.msra.mxu0 %v129
      %166 = vmatprep.subr.mxu0 0.0
      %167 = vmatpush1.msra.mxu0 %v130
      %168 = vmatprep.subr.mxu0 0.0
      %169 = vmatpush1.msra.mxu0 %v131
      %170 = vmatprep.subr.mxu0 0.0
      %171 = vmatpush1.msra.mxu0 %v132
      %172 = vmatprep.subr.mxu0 0.0
      %173 = vmatpush1.msra.mxu0 0.0
      %174 = vmatprep.subr.mxu0 0.0
      %175 = vmatpush1.msra.mxu0 0.0
      %176 = vmatprep.subr.mxu0 0.0
      %177 = vmatpush1.msra.mxu0 0.0
      %178 = vmatprep.subr.mxu0 0.0
      %179 = vmatpush1.msra.mxu0 0.0
      %180 = vmatprep.subr.mxu0 0.0
      %181 = vmatpush1.msra.mxu0 0.0
      %182 = vmatprep.subr.mxu0 0.0
      %183 = vmatpush1.msra.mxu0 0.0
      %184 = vmatprep.subr.mxu0 0.0
      %185 = vmatpush1.msra.mxu0 0.0
      %186 = vmatprep.subr.mxu0 0.0
      %187 = vmatpush1.msra.mxu0 0.0
      %188 = vmatprep.subr.mxu0 0.0
      %189 = vmatpush1.msra.mxu0 0.0
      %190 = vmatprep.subr.mxu0 0.0
      %191 = vmatpush1.msra.mxu0 0.0
      %192 = vmatprep.subr.mxu0 0.0
      %193 = vmatpush1.msra.mxu0 0.0
      %194 = vmatprep.subr.mxu0 0.0
      %195 = vmatpush1.msra.mxu0 0.0
      %196 = vmatprep.subr.mxu0 0.0
      %197 = vmatpush1.msra.mxu0 0.0
      %198 = vmatprep.subr.mxu0 0.0
      %199 = vmatpush1.msra.mxu0 0.0
      %200 = vmatprep.subr.mxu0 0.0
      %201 = vmatpush1.msra.mxu0 0.0
      %202 = vmatprep.subr.mxu0 0.0
      %203 = vmatpush1.msra.mxu0 0.0
      %204 = vmatprep.mubr.f32.mxu0 0.0
      %205 = vmatmul.mubr.f32.gmra.mrb[0].mxu0 %v116
      %v206 = vpop.f32.mrb[0].mxu0
      %v207 = vadd.f32 %v138, %v206
      %v208 = vpop.f32.mrb[0].mxu0
      %209 = vdwg.mxu0
      %v210 = vmax.f32 %v207, 0.0
      %211 = vst [vmem:[#allocation3] sm:$0xff] %v210
    $region25: #{gcn_layer.1} parent=1 // pred_fallthru
      _
    // Predicated region
    $region26: #{gcn_layer.1} parent=1 // pred_check
      _
    $region27: #{gcn_layer.1} parent=1 // pred_check_branch
      %213 = sbr.rel (0) target = $region29
    $region28: #{gcn_layer.1} parent=1 // pred_region
      %s215 = ssub.s32 128, 128
      %216 = vsyncadd [#allocation4], %s215
      %s218 = sshll.u32 [#allocation3], 4
      %s219 = int_to_ptr.vmem [resolvable:$true] %s218
      %221 = dma.vmem_to_hbm [thread:$0]  %s219, 128, %s4, [#allocation4]
    $region29: #{gcn_layer.1} parent=1 // pred_fallthru
      _
    // Predicated region
    $region30: #{gcn_layer.1} parent=1 // pred_check
      _
    $region31: #{gcn_layer.1} parent=1 // pred_check_branch
      %223 = sbr.rel (0) target = $region33
    $region32: #{gcn_layer.1} parent=1 // pred_region
      %224 = dma.done [#allocation4], 128
    $region33: #{gcn_layer.1} parent=1 // pred_fallthru
      _
    %225 = vsyncpa [#allocation4], 1

</llo_original>
